<compile_context>
chip_gen: v5e
topology: v5e:2x2
jax: 0.10.0
libtpu: 0.0.40
codegen_flags: <defaults>
</compile_context>

<pallas_src>
import math
import functools

import jax
import jax.numpy as jnp
from jax.experimental import pallas as pl
from jax.experimental.pallas import tpu as pltpu


def _round_up(x, m):
    return ((x + m - 1) // m) * m


def _vmem_capacity_bytes():
    """Physical VMEM of the attached TPU; conservative fallback (v7x per-TC)."""
    try:
        return int(pltpu.get_tpu_info().vmem_capacity_bytes)
    except Exception:
        return 64 << 20


def _row_align_for(out_dtype):
    itemsize = jnp.dtype(out_dtype).itemsize
    if itemsize == 1:
        return 32
    if itemsize == 2:
        return 16
    return 8


def _choose_tiles(B, C, *, max_elems, row_align, max_tile_c=8192):
    """Lane-dense tiling: widen over classes first (last dim -> 128 lanes),
    then rows, within a per-block element budget derived from VMEM."""
    tile_c = max(128, min(_round_up(C, 128), max_tile_c))
    tile_b = (max_elems // tile_c) // row_align * row_align
    tile_b = max(row_align, min(tile_b, _round_up(B, row_align)))
    return tile_b, tile_c


def _ensure_two_blocks(B, C, tile_b, tile_c, row_align):
    """Make sure the grid has >=2 blocks when the shape allows it, so v7x's two
    TensorCores both get work (negligible overhead on 1-TC chips)."""
    if pl.cdiv(B, tile_b) * pl.cdiv(C, tile_c) >= 2:
        return tile_b, tile_c
    if tile_c >= 256 and C > tile_c // 2:
        return tile_b, tile_c // 2
    if tile_b >= 2 * row_align and B > tile_b // 2:
        return _round_up(tile_b // 2, row_align), tile_c
    return tile_b, tile_c


def _margin_kernel(labels_ref, logits_ref, out_ref, *, s, m1, m3,
                   s_cos_m, s_sin_m, theta, s_sinmm, s_m3, easy_margin):
    # labels_ref: (TB, 1) int32, logits_ref: (TB, TC), out_ref: (TB, TC)
    logits = logits_ref[...]
    labels = labels_ref[...]                              # (TB, 1)
    _, tc = logits.shape

    # (1, TC) column ids; broadcast against (TB, 1) labels -> (TB, TC) mask.
    col_off = pl.program_id(1) * tc
    col_ids = jax.lax.broadcasted_iota(jnp.int32, (1, tc), 1) + col_off
    is_target = (col_ids == labels) & (labels != -1)

    t = logits.astype(jnp.float32)                        # margin math in f32
    out = t * s                                           # full tile: one vmul

    if m1 == 1.0 and m3 == 0.0:
        # ArcFace margin. Extract the per-row target logit into a (TB, 1) vector
        # (masked select + lane reduce on the XLU), do the sqrt/blend/threshold math
        # only on that vector, then apply a single broadcasted where fix-up.
        # Rows whose target column lies in a different C-tile produce a dummy value
        # here, but is_target is False for them in this tile so it is never selected.
        tgt = jnp.sum(jnp.where(is_target, t, 0.0), axis=-1, keepdims=True)  # (TB,1)
        sin_theta = jnp.sqrt(jnp.maximum(1.0 - tgt * tgt, 0.0))
        cos_theta_m_s = tgt * s_cos_m - sin_theta * s_sin_m   # already scaled by s
        if easy_margin:
            tgt_s = jnp.where(tgt > 0.0, cos_theta_m_s, tgt * s)
        else:
            tgt_s = jnp.where(tgt > theta, cos_theta_m_s, tgt * s - s_sinmm)
        out = jnp.where(is_target, tgt_s, out)            # (TB,1) broadcast fix-up
    elif m3 > 0.0:
        # CosFace margin: subtract s*m3 only on the target logit.
        out = jnp.where(is_target, out - s_m3, out)
    else:
        raise ValueError("unsupported margin configuration (matches PyTorch `raise`)")

    out_ref[...] = out.astype(out_ref.dtype)


def combined_margin_loss(logits, labels, *, s, m1, m2, m3,
                         easy_margin=False, out_dtype=None,
                         tile_b=None, tile_c=None):
    """Pallas TPU implementation of CombinedMarginLoss.forward.

    logits: [B, C] float (cosine similarities), labels: [B] int32 (-1 = no positive class).
    Returns margin-adjusted, scaled logits of shape [B, C] (dtype = out_dtype or logits.dtype).
    For best bandwidth pass bf16 logits (and leave out_dtype=None) so the in-place alias
    stays active; out_dtype different from logits.dtype allocates a second B x C buffer.
    """
    B, C = logits.shape
    out_dtype = logits.dtype if out_dtype is None else jnp.dtype(out_dtype)
    in_dtype = jnp.dtype(logits.dtype)
    row_align = _row_align_for(out_dtype)

    # Generation-aware VMEM budget: scoped limit ~60% of physical, tiles ~75% of that
    # (double-buffered in + out blocks).
    vmem_cap = _vmem_capacity_bytes()
    vmem_limit = max(32 << 20, min(int(vmem_cap * 0.6), 96 << 20))
    bytes_per_elem = 2 * (in_dtype.itemsize + out_dtype.itemsize)  # 2x = double buffer
    max_elems = min(max(1 << 20, (vmem_limit * 3 // 4) // bytes_per_elem), 4 << 20)

    auto_b, auto_c = _choose_tiles(B, C, max_elems=max_elems, row_align=row_align)
    tile_b = auto_b if tile_b is None else max(row_align, _round_up(tile_b, row_align))
    tile_c = auto_c if tile_c is None else max(128, _round_up(tile_c, 128))
    tile_b, tile_c = _ensure_two_blocks(B, C, tile_b, tile_c, row_align)

    cos_m = math.cos(m2)
    sin_m = math.sin(m2)
    theta = math.cos(math.pi - m2)
    sinmm = math.sin(math.pi - m2) * m2
    s = float(s)

    labels2d = labels.astype(jnp.int32).reshape(B, 1)

    kernel = functools.partial(
        _margin_kernel,
        s=s, m1=float(m1), m3=float(m3),
        s_cos_m=s * cos_m, s_sin_m=s * sin_m, theta=float(theta),
        s_sinmm=s * sinmm, s_m3=s * float(m3),
        easy_margin=easy_margin,
    )

    # C innermost: labels block index (i, 0) is constant across the C sweep -> no re-DMA.
    grid = (pl.cdiv(B, tile_b), pl.cdiv(C, tile_c))

    # In-place rewrite of logits when dtypes match (no second B x C HBM buffer).
    io_aliases = {1: 0} if out_dtype == in_dtype else {}

    return pl.pallas_call(
        kernel,
        out_shape=jax.ShapeDtypeStruct((B, C), out_dtype),
        grid_spec=pltpu.PrefetchScalarGridSpec(
            num_scalar_prefetch=0,
            grid=grid,
            in_specs=[
                pl.BlockSpec((tile_b, 1), lambda i, j: (i, 0)),       # labels
                pl.BlockSpec((tile_b, tile_c), lambda i, j: (i, j)),  # logits
            ],
            out_specs=pl.BlockSpec((tile_b, tile_c), lambda i, j: (i, j)),
        ),
        input_output_aliases=io_aliases,
        compiler_params=pltpu.CompilerParams(
            dimension_semantics=("parallel", "parallel"),
            vmem_limit_bytes=int(vmem_limit),
        ),
    )(labels2d, logits)


def _reference(logits, labels, *, s, m1, m2, m3, easy_margin=False):
    """Pure-JAX reference mirroring the PyTorch forward."""
    cos_m = math.cos(m2)
    sin_m = math.sin(m2)
    theta = math.cos(math.pi - m2)
    sinmm = math.sin(math.pi - m2) * m2
    B, C = logits.shape
    col = jnp.arange(C)[None, :]
    is_target = (col == labels[:, None]) & (labels[:, None] != -1)
    t = logits.astype(jnp.float32)
    if m1 == 1.0 and m3 == 0.0:
        sin_theta = jnp.sqrt(jnp.maximum(1.0 - t * t, 0.0))
        cos_theta_m = t * cos_m - sin_theta * sin_m
        if easy_margin:
            final = jnp.where(t > 0.0, cos_theta_m, t)
        else:
            final = jnp.where(t > theta, cos_theta_m, t - sinmm)
    else:
        final = t - m3
    return jnp.where(is_target, final, t) * s


if __name__ == "__main__":
    key = jax.random.PRNGKey(0)
    B, C = 8, 256  # small demo shapes
    k1, k2 = jax.random.split(key)

    # logits are cosine similarities in [-1, 1] (as in ArcFace usage)
    logits = jnp.tanh(jax.random.normal(k1, (B, C), dtype=jnp.float32))
    labels = jax.random.randint(k2, (B,), 0, C, dtype=jnp.int32)
    labels = labels.at[3].set(-1)  # one row with no positive class

    s, m1, m2, m3 = 64.0, 1.0, 0.5, 0.0  # ArcFace configuration

    out = combined_margin_loss(logits, labels, s=s, m1=m1, m2=m2, m3=m3)
    out = jax.block_until_ready(out)
    ref = _reference(logits, labels, s=s, m1=m1, m2=m2, m3=m3)
    assert out.shape == (B, C)
    assert jnp.allclose(out, ref, atol=1e-4, rtol=1e-5), "mismatch vs reference (ArcFace)"

    # CosFace (m3 > 0) branch.
    out2 = combined_margin_loss(logits, labels, s=64.0, m1=1.0, m2=0.0, m3=0.4)
    out2 = jax.block_until_ready(out2)
    ref2 = _reference(logits, labels, s=64.0, m1=1.0, m2=0.0, m3=0.4)
    assert jnp.allclose(out2, ref2, atol=1e-4, rtol=1e-5), "mismatch vs reference (CosFace)"

    # Non-divisible shapes exercise the pl.cdiv / partial-tile path.
    B3, C3 = 12, 200
    k3, k4 = jax.random.split(k2)
    logits3 = jnp.tanh(jax.random.normal(k3, (B3, C3), dtype=jnp.float32))
    labels3 = jax.random.randint(k4, (B3,), 0, C3, dtype=jnp.int32)
    labels3 = labels3.at[0].set(-1)
    out3 = combined_margin_loss(logits3, labels3, s=s, m1=m1, m2=m2, m3=m3)
    out3 = jax.block_until_ready(out3)
    ref3 = _reference(logits3, labels3, s=s, m1=m1, m2=m2, m3=m3)
    assert jnp.allclose(out3, ref3, atol=1e-4, rtol=1e-5), "mismatch vs reference (tail tiles)"

    # bf16 in -> bf16 out: halves read AND write bandwidth and keeps the in-place alias;
    # margin math stays in f32 inside the kernel.
    logits_bf16 = logits.astype(jnp.bfloat16)
    out4 = combined_margin_loss(logits_bf16, labels, s=s, m1=m1, m2=m2, m3=m3)
    out4 = jax.block_until_ready(out4)
    assert out4.dtype == jnp.bfloat16
    ref4 = _reference(logits_bf16.astype(jnp.float32), labels, s=s, m1=m1, m2=m2, m3=m3)
    assert jnp.allclose(out4.astype(jnp.float32), ref4, atol=1.0, rtol=2e-2), \
        "mismatch vs reference (bf16 I/O)"

    # f32 in -> bf16 out (alias dropped; second HBM buffer allocated).
    out5 = combined_margin_loss(logits, labels, s=s, m1=m1, m2=m2, m3=m3,
                                out_dtype=jnp.bfloat16)
    out5 = jax.block_until_ready(out5)
    assert out5.dtype == jnp.bfloat16
    assert jnp.allclose(out5.astype(jnp.float32), ref, atol=1.0, rtol=2e-2), \
        "mismatch vs reference (bf16 out)"

    print("KERNEL_OK")
</pallas_src>

<mosaic_0001>
module attributes {stable_mosaic.version = 11 : i64} {
  func.func @_margin_kernel(%arg0: i32, %arg1: i32, %arg2: memref<8x1xi32, #tpu.memory_space<vmem>>, %arg3: memref<8x128xf32, #tpu.memory_space<vmem>>, %arg4: memref<8x128xf32, #tpu.memory_space<vmem>>) attributes {dimension_semantics = [#tpu.dimension_semantics<parallel>, #tpu.dimension_semantics<parallel>], iteration_bounds = array<i64: 1, 2>, scalar_prefetch = 0 : i64, scratch_operands = 0 : i64, tpu.core_type = #tpu.core_type<tc>, window_params = [{transform_indices = @transform_0, window_bounds = array<i64: 8, 1>}, {transform_indices = @transform_1, window_bounds = array<i64: 8, 128>}, {transform_indices = @transform_2, window_bounds = array<i64: 8, 128>}]} {
    %c0 = arith.constant 0 : index
    %c0_0 = arith.constant 0 : index
    %0 = vector.load %arg3[%c0, %c0_0] : memref<8x128xf32, #tpu.memory_space<vmem>>, vector<8x128xf32>
    %c0_1 = arith.constant 0 : index
    %c0_2 = arith.constant 0 : index
    %1 = vector.load %arg2[%c0_1, %c0_2] : memref<8x1xi32, #tpu.memory_space<vmem>>, vector<8x1xi32>
    %c128_i32 = arith.constant 128 : i32
    %2 = arith.muli %arg1, %c128_i32 : i32
    %3 = tpu.iota {dimensions = array<i32: 1>} : vector<1x128xi32>
    %4 = vector.broadcast %2 : i32 to vector<1x128xi32>
    %5 = arith.addi %3, %4 : vector<1x128xi32>
    %6 = vector.broadcast %5 : vector<1x128xi32> to vector<8x128xi32>
    %7 = vector.broadcast %1 : vector<8x1xi32> to vector<8x128xi32>
    %8 = arith.cmpi eq, %6, %7 : vector<8x128xi32>
    %c-1_i32 = arith.constant -1 : i32
    %9 = vector.broadcast %c-1_i32 : i32 to vector<8x1xi32>
    %10 = arith.cmpi ne, %1, %9 : vector<8x1xi32>
    %11 = vector.broadcast %10 : vector<8x1xi1> to vector<8x128xi1>
    %12 = arith.andi %8, %11 : vector<8x128xi1>
    %cst = arith.constant 6.400000e+01 : f32
    %13 = vector.broadcast %cst : f32 to vector<8x128xf32>
    %14 = arith.mulf %0, %13 : vector<8x128xf32>
    %cst_3 = arith.constant 0.000000e+00 : f32
    %15 = vector.broadcast %cst_3 : f32 to vector<8x128xf32>
    %16 = arith.select %12, %0, %15 : vector<8x128xi1>, vector<8x128xf32>
    %cst_4 = arith.constant dense<0.000000e+00> : vector<8xf32>
    %17 = vector.multi_reduction <add>, %16, %cst_4 [1] : vector<8x128xf32> to vector<8xf32>
    %18 = vector.shape_cast %17 : vector<8xf32> to vector<8x1xf32>
    %19 = arith.mulf %18, %18 : vector<8x1xf32>
    %cst_5 = arith.constant 1.000000e+00 : f32
    %20 = vector.broadcast %cst_5 : f32 to vector<8x1xf32>
    %21 = arith.subf %20, %19 : vector<8x1xf32>
    %cst_6 = arith.constant 0.000000e+00 : f32
    %22 = vector.broadcast %cst_6 : f32 to vector<8x1xf32>
    %23 = arith.maximumf %21, %22 : vector<8x1xf32>
    %24 = math.sqrt %23 : vector<8x1xf32>
    %cst_7 = arith.constant 56.1652832 : f32
    %25 = vector.broadcast %cst_7 : f32 to vector<8x1xf32>
    %26 = arith.mulf %18, %25 : vector<8x1xf32>
    %cst_8 = arith.constant 30.6832352 : f32
    %27 = vector.broadcast %cst_8 : f32 to vector<8x1xf32>
    %28 = arith.mulf %24, %27 : vector<8x1xf32>
    %29 = arith.subf %26, %28 : vector<8x1xf32>
    %cst_9 = arith.constant -0.87758255 : f32
    %30 = vector.broadcast %cst_9 : f32 to vector<8x1xf32>
    %31 = arith.cmpf ogt, %18, %30 : vector<8x1xf32>
    %cst_10 = arith.constant 6.400000e+01 : f32
    %32 = vector.broadcast %cst_10 : f32 to vector<8x1xf32>
    %33 = arith.mulf %18, %32 : vector<8x1xf32>
    %cst_11 = arith.constant 15.3416176 : f32
    %34 = vector.broadcast %cst_11 : f32 to vector<8x1xf32>
    %35 = arith.subf %33, %34 : vector<8x1xf32>
    %36 = arith.select %31, %29, %35 : vector<8x1xi1>, vector<8x1xf32>
    %37 = vector.shape_cast %36 : vector<8x1xf32> to vector<8x1xf32>
    %38 = vector.broadcast %37 : vector<8x1xf32> to vector<8x128xf32>
    %39 = arith.select %12, %38, %14 : vector<8x128xi1>, vector<8x128xf32>
    %c0_12 = arith.constant 0 : index
    %c0_13 = arith.constant 0 : index
    %40 = vector.load %arg4[%c0_12, %c0_13] : memref<8x128xf32, #tpu.memory_space<vmem>>, vector<8x128xf32>
    tpu.vector_store %arg4[%c0_12, %c0_13], %39 {strides = array<i32>} : memref<8x128xf32, #tpu.memory_space<vmem>>, vector<8x128xf32>,
    return
  }
  func.func @transform_0(%arg0: i32, %arg1: i32) -> (i32, i32) {
    %c0_i32 = arith.constant 0 : i32
    %c0_i32_0 = arith.constant 0 : i32
    return %arg0, %c0_i32 : i32, i32
  }
  func.func @transform_1(%arg0: i32, %arg1: i32) -> (i32, i32) {
    %c0_i32 = arith.constant 0 : i32
    return %arg0, %arg1 : i32, i32
  }
  func.func @transform_2(%arg0: i32, %arg1: i32) -> (i32, i32) {
    %c0_i32 = arith.constant 0 : i32
    return %arg0, %arg1 : i32, i32
  }
}

</mosaic_0001>

<llo_original>
// kernel: tpu_custom_call.1
$region0: #{tpu_custom_call.1}
  #allocation0 [shape = 'u32[]', space=smem, size = 0x4, offset = 0x4, fixed_abs, tag = 'smem constant byte address 0x4 - core index']
  #allocation1 [shape = 'u32[72,128]{1,0:T(1,128)}', space=vmem, size = 0x9000, scoped, tag = 'internal scratch']
  %s0 = inlined_call_operand.vmem [shape: s32[8,1], index: 0, kind: input, shape index: {}]
  %s1 = inlined_call_operand.hbm [shape: f32[8,256], index: 1, kind: input, shape index: {}, may-alias: {1,2}]
  %s2 = inlined_call_operand.hbm [shape: f32[8,256], index: 2, kind: output, shape index: {}, may-alias: {1,2}]
  %s3 = sld [smem:[#allocation0]]
  $region45: #{tpu_custom_call.1} parent=0
    _
  %s5 = ssub.s32 1, %s3
  %s6 = scalar_select 0, %s5, %s3
  $region1: #{tpu_custom_call.1} parent=0
    #allocation2 [shape = 'u8[8192]{0}', space=vmem, size = 0x2000, scoped, tag = 'input window, operand 1']
    #allocation3 [shape = 's32[2]{0}', space=sflag, size = 0x8, scoped, tag = 'scoped memory for tpu_custom_call.1']
    #allocation4 [shape = 's32[2]{0}', space=sflag, size = 0x8, scoped, tag = 'scoped memory for tpu_custom_call.1']
    #allocation5 [shape = 'u8[8192]{0}', space=vmem, size = 0x2000, scoped, tag = 'output window, operand 0']
    %7 = vsyncpa [#allocation3], 0
    %s8 = scalar_lea.sflag [#allocation3], 1
    %9 = vsyncpa %s8, 0
    %10 = vsyncpa [#allocation4], 0
    %s11 = scalar_lea.sflag [#allocation4], 1
    %12 = vsyncpa %s11, 0
    loop: start=0, step=1, limit=4
    $region2: #{tpu_custom_call.1} parent=1 // loop_pre_header
      _
    $region3: #{tpu_custom_call.1} parent=1 // loop_header
      %s14 = sphi 0, %s18
      %p15 = scmp.ge.s32.totalorder %s14, 4
      %s21 = sphi 0, %s33
      %s22 = sphi 0, %s29
      %s23 = sphi 0, %s21
      %s24 = sphi 0, %s22
      %s25 = sphi 0, %s23
      %s26 = sphi 0, %s24
      %s36 = sphi 0, %s38
      %s39 = sphi 0, %s36
      %s40 = sphi 0, %s39
      %s56 = sphi 0, %s40
      %s64 = sphi 0, %s66
      %s67 = sphi 0, %s64
      %s68 = sphi 0, %s67
      %s84 = sphi 0, %s68
      %s92 = sphi 0, %s94
      %s95 = sphi 0, %s92
      %s96 = sphi 0, %s95
      %s112 = sphi 0, %s96
    $region4: #{tpu_custom_call.1} parent=1 // loop_header_branch
      %17 = sbr.rel (%p15) target = $region8
    $region5: #{tpu_custom_call.1} parent=1 // loop_body
      %s19 = ssub.s32 %s14, 1
      %s20 = ssub.s32 %s14, 2
      %s27 = sadd.s32 1, %s22
      %p28 = scmp.ge.s32.totalorder %s27, 2
      %s29 = scalar_select %p28, 0, %s27
      %s30 = sadd.s32 1, %s21
      %s31 = scalar_select %p28, %s30, %s21
      %p32 = scmp.ge.s32.totalorder %s31, 1
      %s33 = scalar_select %p32, 0, %s31
      %s34 = ssub.s32 %s21, %s33
      %p35 = scmp.eq.s32.totalorder %s34, 0
      %s37 = sadd.s32 %s36, 1
      %s38 = scalar_select %p35, %s36, %s37
      %p41 = pneg %p35
      %p42 = scmp.eq.s32.totalorder %s14, 1
      %p43 = por %p41, %p42
      %p44 = scmp.ne.s32.totalorder %s36, %s39
      %p45 = scmp.eq.s32.totalorder %s14, 0
      %p46 = por %p44, %p45
      %p47 = scmp.ne.s32.totalorder %s36, %s39
      %p48 = scmp.eq.s32.totalorder %s19, 1
      %p49 = por %p47, %p48
      %p50 = scmp.ne.s32.totalorder %s39, %s40
      %p51 = scmp.eq.s32.totalorder %s19, 0
      %p52 = por %p50, %p51
      %p53 = scmp.ne.s32.totalorder %s39, %s40
      %p54 = scmp.eq.s32.totalorder %s20, 1
      %p55 = por %p53, %p54
      %p57 = scmp.ne.s32.totalorder %s40, %s56
      %p58 = scmp.eq.s32.totalorder %s20, 0
      %p59 = por %p57, %p58
      %s60 = ssub.s32 %s21, %s33
      %s61 = ssub.s32 %s22, %s29
      %s62 = sor.u32 %s60, %s61
      %p63 = scmp.eq.s32.totalorder %s62, 0
      %s65 = sadd.s32 %s64, 1
      %s66 = scalar_select %p63, %s64, %s65
      %p69 = pneg %p63
      %p70 = scmp.eq.s32.totalorder %s14, 1
      %p71 = por %p69, %p70
      %p72 = scmp.ne.s32.totalorder %s64, %s67
      %p73 = scmp.eq.s32.totalorder %s14, 0
      %p74 = por %p72, %p73
      %p75 = scmp.ne.s32.totalorder %s64, %s67
      %p76 = scmp.eq.s32.totalorder %s19, 1
      %p77 = por %p75, %p76
      %p78 = scmp.ne.s32.totalorder %s67, %s68
      %p79 = scmp.eq.s32.totalorder %s19, 0
      %p80 = por %p78, %p79
      %p81 = scmp.ne.s32.totalorder %s67, %s68
      %p82 = scmp.eq.s32.totalorder %s20, 1
      %p83 = por %p81, %p82
      %p85 = scmp.ne.s32.totalorder %s68, %s84
      %p86 = scmp.eq.s32.totalorder %s20, 0
      %p87 = por %p85, %p86
      %s88 = ssub.s32 %s21, %s33
      %s89 = ssub.s32 %s22, %s29
      %s90 = sor.u32 %s88, %s89
      %p91 = scmp.eq.s32.totalorder %s90, 0
      %s93 = sadd.s32 %s92, 1
      %s94 = scalar_select %p91, %s92, %s93
      %p97 = pneg %p91
      %p98 = scmp.eq.s32.totalorder %s14, 1
      %p99 = por %p97, %p98
      %p100 = scmp.ne.s32.totalorder %s92, %s95
      %p101 = scmp.eq.s32.totalorder %s14, 0
      %p102 = por %p100, %p101
      %p103 = scmp.ne.s32.totalorder %s92, %s95
      %p104 = scmp.eq.s32.totalorder %s19, 1
      %p105 = por %p103, %p104
      %p106 = scmp.ne.s32.totalorder %s95, %s96
      %p107 = scmp.eq.s32.totalorder %s19, 0
      %p108 = por %p106, %p107
      %p109 = scmp.ne.s32.totalorder %s95, %s96
      %p110 = scmp.eq.s32.totalorder %s20, 1
      %p111 = por %p109, %p110
      %p113 = scmp.ne.s32.totalorder %s96, %s112
      %p114 = scmp.eq.s32.totalorder %s20, 0
      %p115 = por %p113, %p114
      %p116 = scmp.le.s32.totalorder 1, %s14
      %p117 = scmp.lt.s32.totalorder %s14, 3
      %p118 = pnand %p116, %p117
      %p119 = pneg %p118
      // Predicated region
      $region9: #{tpu_custom_call.1} parent=5 // pred_check
        _
      $region10: #{tpu_custom_call.1} parent=5 // pred_check_branch
        %121 = sbr.rel (%p118) target = $region12
      $region11: #{tpu_custom_call.1} parent=5 // pred_region
        %s122 = ssub.s32 %s14, 1
        // Predicated region
        $region13: #{tpu_custom_call.1} parent=11 // pred_check
          %p123 = pneg %p52
        $region14: #{tpu_custom_call.1} parent=11 // pred_check_branch
          %125 = sbr.rel (%p123) target = $region16
        $region15: #{tpu_custom_call.1} parent=11 // pred_region
          %p126 = scmp.lt.s32.totalorder %s23, 0
          %s127 = scalar_select %p126, %s23, 0
          %s128 = smul.addr %s127, 8
          %s129 = scalar_lea.vmem %s0, %s128
        $region16: #{tpu_custom_call.1} parent=11 // pred_fallthru
          _
      $region12: #{tpu_custom_call.1} parent=5 // pred_fallthru
        _
      %p130 = scmp.lt.s32.totalorder %s14, 2
      // Predicated region
      $region17: #{tpu_custom_call.1} parent=5 // pred_check
        %p131 = pneg %p130
      $region18: #{tpu_custom_call.1} parent=5 // pred_check_branch
        %133 = sbr.rel (%p131) target = $region20
      $region19: #{tpu_custom_call.1} parent=5 // pred_region
        // Predicated region
        $region21: #{tpu_custom_call.1} parent=19 // pred_check
          %p134 = pneg %p74
        $region22: #{tpu_custom_call.1} parent=19 // pred_check_branch
          %136 = sbr.rel (%p134) target = $region24
        $region23: #{tpu_custom_call.1} parent=19 // pred_region
          %s137 = sand.u32 %s64, 1
          %s138 = scalar_lea.sflag [#allocation3], %s137
          %s139 = sand.u32 %s64, 1
          %s140 = smul.addr %s139, 8
          %s141 = scalar_lea.vmem [#allocation2], %s140
          %143 = vsyncadd %s138, 0
          %s144 = smul.addr %s21, 2
          %s145 = sadd.s32 %s22, %s144
          %s146 = smul.addr %s145, 8
          %s147 = scalar_lea.hbm %s1, %s146
          %s149 = sshll.u32 %s147, 4
          %s150 = int_to_ptr.hbm [resolvable:$true] %s149
          %s151 = sshll.u32 %s141, 4
          %s152 = int_to_ptr.vmem [resolvable:$true] %s151
          %154 = dma.hbm_to_vmem [thread:$0]  %s150, 128, %s152, %s138
        $region24: #{tpu_custom_call.1} parent=19 // pred_fallthru
          _
      $region20: #{tpu_custom_call.1} parent=5 // pred_fallthru
        _
      %p155 = scmp.le.s32.totalorder 1, %s14
      %p156 = scmp.lt.s32.totalorder %s14, 3
      %p157 = pnand %p155, %p156
      %p158 = pneg %p157
      // Predicated region
      $region25: #{tpu_custom_call.1} parent=5 // pred_check
        _
      $region26: #{tpu_custom_call.1} parent=5 // pred_check_branch
        %160 = sbr.rel (%p157) target = $region28
      $region27: #{tpu_custom_call.1} parent=5 // pred_region
        %s161 = ssub.s32 %s14, 1
        %s162 = sand.u32 %s67, 1
        %s163 = scalar_lea.sflag [#allocation3], %s162
        %s164 = sand.u32 %s67, 1
        %s165 = smul.addr %s164, 8
        %s166 = scalar_lea.vmem [#allocation2], %s165
        // Predicated region
        $region29: #{tpu_custom_call.1} parent=27 // pred_check
          %p167 = pneg %p80
        $region30: #{tpu_custom_call.1} parent=27 // pred_check_branch
          %169 = sbr.rel (%p167) target = $region32
        $region31: #{tpu_custom_call.1} parent=27 // pred_region
          %171 = dma.done %s163, 128
        $region32: #{tpu_custom_call.1} parent=27 // pred_fallthru
          _
        %p172 = scmp.lt.s32.totalorder %s23, 0
        %s173 = scalar_select %p172, %s23, 0
        %s174 = smul.addr %s173, 8
        %s175 = scalar_lea.vmem %s0, %s174
        %p176 = pneg %p52
        %p177 = pneg %p49
        %s178 = sand.u32 %s67, 1
        %s179 = scalar_lea.sflag [#allocation3], %s178
        %s180 = sand.u32 %s67, 1
        %s181 = smul.addr %s180, 8
        %s182 = scalar_lea.vmem [#allocation2], %s181
        %p183 = pneg %p80
        %p184 = pneg %p77
        %p185 = pneg %p108
        %p186 = pneg %p105
        %s187 = sand.u32 %s95, 1
        %s188 = scalar_lea.sflag [#allocation4], %s187
        %s189 = sand.u32 %s95, 1
        %s190 = smul.addr %s189, 8
        %s191 = scalar_lea.vmem [#allocation5], %s190
        %p192 = scmp.lt.s32.totalorder %s23, 0
        %s193 = scalar_select %p192, %s23, 0
        %s194 = smul.addr %s193, 8
        %s195 = scalar_lea.vmem %s0, %s194
        %v196 = vld [vmem:[%s166] sm:$0xff]
        %v197 = vld [vmem:[%s195] sm:$0xff]
        %s198 = smul.u32 %s24, 128
        %v199 = vlaneseq
        %v200 = vand.u32 %v199, 127
        %v201 = vstv %s198
        %v202 = vadd.s32 %v200, %v201
        %203 = vset.pattern.permute.xlu0 0
        %204 = vperm.xlu0 %203, %v197
        %v205 = vpop.permute.xlu0 %204
        %vm206 = vcmp.eq.s32.totalorder %v202, %v205
        %vm207 = vcmp.ne.s32.totalorder %v197, 4294967295
        %v208 = vsel %vm207, 1, 0
        %209 = vset.pattern.permute.xlu0 0
        %210 = vperm.xlu0 %209, %v208
        %v211 = vpop.permute.xlu0 %210
        %vm212 = vcmp.eq.s32.totalorder %v211, 1
        %vm213 = vmand %vm206, %vm212
        %v214 = vmul.f32 %v196, 64.0
        %v215 = vsel %vm213, %v196, 0.0
        %216 = vadd.xlane.f32.xlu0 %v215
        %v217 = vpop.xlane.xlu0 %216
        %v218 = vmul.f32 %v217, %v217
        %v219 = vsub.f32 1.0, %v218
        %v220 = vmax.f32 %v219, 0.0
        %v221 = vrsqrt.pop %v220
        %v222 = vmul.f32 %v221, %v220
        %v223 = vmul.f32 %v222, %v221
        %v224 = vmul.f32 0.5, %v223
        %v225 = vsub.f32 1.5, %v224
        %v226 = vmul.f32 %v221, %v225
        %v227 = vmul.f32 %v220, %v226
        %vm228 = vcmp.eq.f32.partialorder %v220, inf
        %v229 = vsel %vm228, %v220, %v227
        %vm230 = vcmp.eq.f32.partialorder %v220, 0.0
        %v231 = vand.u32 %v220, 2147483648
        %v232 = vsel %vm230, %v231, %v229
        %v233 = vmul.f32 %v217, 56.165283
        %v234 = vmul.f32 %v232, 30.683235
        %v235 = vsub.f32 %v233, %v234
        %vm236 = vcmp.gt.f32.partialorder %v217, -0.87758255
        %v237 = vmul.f32 %v217, 64.0
        %v238 = vsub.f32 %v237, 15.341618
        %v239 = vsel %vm236, %v235, %v238
        %v240 = vsel %vm213, %v239, %v214
        %241 = vst [vmem:[%s191] sm:$0xff] %v240
        %s242 = sand.u32 %s95, 1
        %s243 = scalar_lea.sflag [#allocation4], %s242
        %s244 = sand.u32 %s95, 1
        %s245 = smul.addr %s244, 8
        %s246 = scalar_lea.vmem [#allocation5], %s245
        // Predicated region
        $region33: #{tpu_custom_call.1} parent=27 // pred_check
          %p247 = pneg %p105
        $region34: #{tpu_custom_call.1} parent=27 // pred_check_branch
          %249 = sbr.rel (%p247) target = $region36
        $region35: #{tpu_custom_call.1} parent=27 // pred_region
          %251 = vsyncadd %s243, 0
          %s252 = smul.addr %s23, 2
          %s253 = sadd.s32 %s24, %s252
          %s254 = smul.addr %s253, 8
          %s255 = scalar_lea.hbm %s2, %s254
          %s257 = sshll.u32 %s246, 4
          %s258 = int_to_ptr.vmem [resolvable:$true] %s257
          %s259 = sshll.u32 %s255, 4
          %s260 = int_to_ptr.hbm [resolvable:$true] %s259
          %262 = dma.vmem_to_hbm [thread:$0]  %s258, 128, %s260, %s243
        $region36: #{tpu_custom_call.1} parent=27 // pred_fallthru
          _
      $region28: #{tpu_custom_call.1} parent=5 // pred_fallthru
        _
      %p263 = scmp.le.s32.totalorder 2, %s14
      // Predicated region
      $region37: #{tpu_custom_call.1} parent=5 // pred_check
        %p264 = pneg %p263
      $region38: #{tpu_custom_call.1} parent=5 // pred_check_branch
        %266 = sbr.rel (%p264) target = $region40
      $region39: #{tpu_custom_call.1} parent=5 // pred_region
        %s267 = ssub.s32 %s14, 2
        // Predicated region
        $region41: #{tpu_custom_call.1} parent=39 // pred_check
          %p268 = pneg %p111
        $region42: #{tpu_custom_call.1} parent=39 // pred_check_branch
          %270 = sbr.rel (%p268) target = $region44
        $region43: #{tpu_custom_call.1} parent=39 // pred_region
          %s271 = sand.u32 %s96, 1
          %s272 = scalar_lea.sflag [#allocation4], %s271
          %s273 = sand.u32 %s96, 1
          %s274 = smul.addr %s273, 8
          %s275 = scalar_lea.vmem [#allocation5], %s274
          %277 = dma.done %s272, 128
        $region44: #{tpu_custom_call.1} parent=39 // pred_fallthru
          _
      $region40: #{tpu_custom_call.1} parent=5 // pred_fallthru
        _
    $region6: #{tpu_custom_call.1} parent=1 // loop_footer
      %s18 = sadd.s32 1, %s14
    $region7: #{tpu_custom_call.1} parent=1 // loop_footer_branch
      %13 = sbr.rel target = $region3
    $region8: #{tpu_custom_call.1} parent=1 // loop_exit
      _
    %278 = vsyncpa [#allocation3], 1
    %s279 = scalar_lea.sflag [#allocation3], 1
    %280 = vsyncpa %s279, 1
    %281 = vsyncpa [#allocation4], 1
    %s282 = scalar_lea.sflag [#allocation4], 1
    %283 = vsyncpa %s282, 1

</llo_original>
